<compile_context>
chip_gen: v5e
topology: v5e:2x2
jax: 0.10.0
libtpu: 0.0.40
codegen_flags: <defaults>
</compile_context>

<pallas_src>
import jax
import jax.numpy as jnp
from jax.experimental import pallas as pl
from jax.experimental.pallas import tpu as pltpu

_LANES = 128
# 4096 rows * 2944 B/row ≈ 11.5 MiB per grid step (≈ 23 MiB double-buffered).
_TILE_ROWS = 4096
_VMEM_LIMIT_BYTES = 32 * 1024 * 1024  # covers double-buffered footprint + scratch


def _elementwise_kernel(x_ref,
                        add_ref, sub_ref, mul_ref, div_ref,
                        gt_ref, lt_ref, eq_ref):
    # 7 VALU ops / vreg — fully hidden under HBM traffic; keep ops exact
    # (true divide, exact float equality) for faithfulness to the module.
    x = x_ref[...]
    add_ref[...] = x + 2.0
    sub_ref[...] = x - 3.0
    mul_ref[...] = x * 4.0
    div_ref[...] = x / 5.0
    gt_ref[...] = x > 1.0
    lt_ref[...] = x < 2.0
    eq_ref[...] = x == 2.0


def _round_up(v, m):
    return ((v + m - 1) // m) * m


def _choose_tile_rows(rows: int, tile_rows: int) -> int:
    """Block height that is a multiple of 32 (unmasked bool tiles) or the full
    extent, and yields >= 2 grid steps whenever possible so the "parallel"
    grid axis actually feeds both v7x TensorCores on mid-size inputs."""
    if rows <= 32:
        return rows                               # full-extent block (always legal)
    half = _round_up(pl.cdiv(rows, 2), 32)        # guarantee >= 2 steps
    return min(tile_rows, half)


def _run_aligned(x2d):
    rows = x2d.shape[0]
    tile_r = _choose_tile_rows(rows, _TILE_ROWS)
    grid = (pl.cdiv(rows, tile_r),)

    float_shape = jax.ShapeDtypeStruct((rows, _LANES), x2d.dtype)
    bool_shape = jax.ShapeDtypeStruct((rows, _LANES), jnp.bool_)
    blk = pl.BlockSpec((tile_r, _LANES), lambda i: (i, 0))

    n_elems = rows * _LANES
    cost = pl.CostEstimate(
        flops=7 * n_elems,             # 4 arithmetic + 3 compares per element
        transcendentals=0,
        bytes_accessed=23 * n_elems,   # 4 B read + (16 + 3) B written per element
    )

    return pl.pallas_call(
        _elementwise_kernel,
        out_shape=(float_shape, float_shape, float_shape, float_shape,
                   bool_shape, bool_shape, bool_shape),
        grid=grid,
        in_specs=[blk],
        out_specs=(blk,) * 7,
        compiler_params=pltpu.CompilerParams(
            dimension_semantics=("parallel",),
            vmem_limit_bytes=_VMEM_LIMIT_BYTES),
        cost_estimate=cost,
    )(x2d)


def _tail_ops(t):
    return (t + 2.0, t - 3.0, t * 4.0, t / 5.0, t > 1.0, t < 2.0, t == 2.0)


def pt_module_forward(x):
    """Reproduces PtModule.forward semantics for a float input of any shape."""
    orig_shape = x.shape
    total = x.size
    rows = total // _LANES
    tail = total - rows * _LANES

    flat = x.reshape(-1)

    if tail == 0:
        # Common case: zero-copy lane-dense [rows, 128] view, no pad/slice passes.
        outs = _run_aligned(flat.reshape(rows, _LANES))
        return tuple(o.reshape(orig_shape) for o in outs)

    # Misaligned element count: kernel on the 128-aligned prefix, plain-JAX on
    # the (<128 element) tail. Avoids whole-tensor pad + output-slice copies.
    flat_outs = None
    if rows > 0:
        prefix = jax.lax.slice(flat, (0,), (rows * _LANES,)).reshape(rows, _LANES)
        flat_outs = [o.reshape(-1) for o in _run_aligned(prefix)]
    tail_outs = _tail_ops(jax.lax.slice(flat, (rows * _LANES,), (total,)))
    if flat_outs is None:
        flat_outs = list(tail_outs)
    else:
        flat_outs = [jnp.concatenate([a, b]) for a, b in zip(flat_outs, tail_outs)]
    return tuple(o.reshape(orig_shape) for o in flat_outs)


if __name__ == "__main__":
    key = jax.random.PRNGKey(0)
    # Small NCHW input consistent with the module (elementwise -> any shape works).
    x = jax.random.normal(key, (2, 4, 16, 16), dtype=jnp.float32) * 3.0

    fwd = jax.jit(pt_module_forward)
    results = jax.block_until_ready(fwd(x))

    # Lightweight correctness check against plain JAX reference.
    ref = (x + 2.0, x - 3.0, x * 4.0, x / 5.0, x > 1.0, x < 2.0, x == 2.0)
    for got, exp in zip(results, ref):
        assert got.shape == exp.shape, (got.shape, exp.shape)
        assert got.dtype == exp.dtype, (got.dtype, exp.dtype)
        if jnp.issubdtype(got.dtype, jnp.floating):
            assert jnp.allclose(got, exp, atol=1e-6)
        else:
            assert bool(jnp.array_equal(got, exp))

    print("KERNEL_OK")
</pallas_src>

<mosaic_0001>
module attributes {stable_mosaic.version = 11 : i64} {
  func.func @_elementwise_kernel(%arg0: i32, %arg1: memref<16x128xf32, #tpu.memory_space<vmem>>, %arg2: memref<16x128xf32, #tpu.memory_space<vmem>>, %arg3: memref<16x128xf32, #tpu.memory_space<vmem>>, %arg4: memref<16x128xf32, #tpu.memory_space<vmem>>, %arg5: memref<16x128xf32, #tpu.memory_space<vmem>>, %arg6: memref<16x128xi32, #tpu.memory_space<vmem>>, %arg7: memref<16x128xi32, #tpu.memory_space<vmem>>, %arg8: memref<16x128xi32, #tpu.memory_space<vmem>>) attributes {dimension_semantics = [#tpu.dimension_semantics<parallel>], iteration_bounds = array<i64: 1>, scalar_prefetch = 0 : i64, scratch_operands = 0 : i64, tpu.core_type = #tpu.core_type<tc>, window_params = [{transform_indices = @transform_0, window_bounds = array<i64: 16, 128>}, {transform_indices = @transform_1, window_bounds = array<i64: 16, 128>}, {transform_indices = @transform_2, window_bounds = array<i64: 16, 128>}, {transform_indices = @transform_3, window_bounds = array<i64: 16, 128>}, {transform_indices = @transform_4, window_bounds = array<i64: 16, 128>}, {transform_indices = @transform_5, window_bounds = array<i64: 16, 128>}, {transform_indices = @transform_6, window_bounds = array<i64: 16, 128>}, {transform_indices = @transform_7, window_bounds = array<i64: 16, 128>}]} {
    %c0 = arith.constant 0 : index
    %c0_0 = arith.constant 0 : index
    %0 = vector.load %arg1[%c0, %c0_0] : memref<16x128xf32, #tpu.memory_space<vmem>>, vector<16x128xf32>
    %cst = arith.constant 2.000000e+00 : f32
    %1 = vector.broadcast %cst : f32 to vector<16x128xf32>
    %2 = arith.addf %0, %1 : vector<16x128xf32>
    %c0_1 = arith.constant 0 : index
    %c0_2 = arith.constant 0 : index
    %3 = vector.load %arg2[%c0_1, %c0_2] : memref<16x128xf32, #tpu.memory_space<vmem>>, vector<16x128xf32>
    tpu.vector_store %arg2[%c0_1, %c0_2], %2 {strides = array<i32>} : memref<16x128xf32, #tpu.memory_space<vmem>>, vector<16x128xf32>,
    %cst_3 = arith.constant 3.000000e+00 : f32
    %4 = vector.broadcast %cst_3 : f32 to vector<16x128xf32>
    %5 = arith.subf %0, %4 : vector<16x128xf32>
    %c0_4 = arith.constant 0 : index
    %c0_5 = arith.constant 0 : index
    %6 = vector.load %arg3[%c0_4, %c0_5] : memref<16x128xf32, #tpu.memory_space<vmem>>, vector<16x128xf32>
    tpu.vector_store %arg3[%c0_4, %c0_5], %5 {strides = array<i32>} : memref<16x128xf32, #tpu.memory_space<vmem>>, vector<16x128xf32>,
    %cst_6 = arith.constant 4.000000e+00 : f32
    %7 = vector.broadcast %cst_6 : f32 to vector<16x128xf32>
    %8 = arith.mulf %0, %7 : vector<16x128xf32>
    %c0_7 = arith.constant 0 : index
    %c0_8 = arith.constant 0 : index
    %9 = vector.load %arg4[%c0_7, %c0_8] : memref<16x128xf32, #tpu.memory_space<vmem>>, vector<16x128xf32>
    tpu.vector_store %arg4[%c0_7, %c0_8], %8 {strides = array<i32>} : memref<16x128xf32, #tpu.memory_space<vmem>>, vector<16x128xf32>,
    %cst_9 = arith.constant 5.000000e+00 : f32
    %10 = vector.broadcast %cst_9 : f32 to vector<16x128xf32>
    %11 = arith.divf %0, %10 : vector<16x128xf32>
    %c0_10 = arith.constant 0 : index
    %c0_11 = arith.constant 0 : index
    %12 = vector.load %arg5[%c0_10, %c0_11] : memref<16x128xf32, #tpu.memory_space<vmem>>, vector<16x128xf32>
    tpu.vector_store %arg5[%c0_10, %c0_11], %11 {strides = array<i32>} : memref<16x128xf32, #tpu.memory_space<vmem>>, vector<16x128xf32>,
    %cst_12 = arith.constant 1.000000e+00 : f32
    %13 = vector.broadcast %cst_12 : f32 to vector<16x128xf32>
    %14 = arith.cmpf ogt, %0, %13 : vector<16x128xf32>
    %c0_13 = arith.constant 0 : index
    %c0_14 = arith.constant 0 : index
    %15 = vector.load %arg6[%c0_13, %c0_14] : memref<16x128xi32, #tpu.memory_space<vmem>>, vector<16x128xi32>
    %16 = arith.extui %14 : vector<16x128xi1> to vector<16x128xi32>
    %cst_15 = arith.constant dense<0> : vector<16x128xi32>
    %17 = arith.cmpi ne, %15, %cst_15 : vector<16x128xi32>
    tpu.vector_store %arg6[%c0_13, %c0_14], %16 {strides = array<i32>} : memref<16x128xi32, #tpu.memory_space<vmem>>, vector<16x128xi32>,
    %cst_16 = arith.constant 2.000000e+00 : f32
    %18 = vector.broadcast %cst_16 : f32 to vector<16x128xf32>
    %19 = arith.cmpf olt, %0, %18 : vector<16x128xf32>
    %c0_17 = arith.constant 0 : index
    %c0_18 = arith.constant 0 : index
    %20 = vector.load %arg7[%c0_17, %c0_18] : memref<16x128xi32, #tpu.memory_space<vmem>>, vector<16x128xi32>
    %21 = arith.extui %19 : vector<16x128xi1> to vector<16x128xi32>
    %cst_19 = arith.constant dense<0> : vector<16x128xi32>
    %22 = arith.cmpi ne, %20, %cst_19 : vector<16x128xi32>
    tpu.vector_store %arg7[%c0_17, %c0_18], %21 {strides = array<i32>} : memref<16x128xi32, #tpu.memory_space<vmem>>, vector<16x128xi32>,
    %cst_20 = arith.constant 2.000000e+00 : f32
    %23 = vector.broadcast %cst_20 : f32 to vector<16x128xf32>
    %24 = arith.cmpf oeq, %0, %23 : vector<16x128xf32>
    %c0_21 = arith.constant 0 : index
    %c0_22 = arith.constant 0 : index
    %25 = vector.load %arg8[%c0_21, %c0_22] : memref<16x128xi32, #tpu.memory_space<vmem>>, vector<16x128xi32>
    %26 = arith.extui %24 : vector<16x128xi1> to vector<16x128xi32>
    %cst_23 = arith.constant dense<0> : vector<16x128xi32>
    %27 = arith.cmpi ne, %25, %cst_23 : vector<16x128xi32>
    tpu.vector_store %arg8[%c0_21, %c0_22], %26 {strides = array<i32>} : memref<16x128xi32, #tpu.memory_space<vmem>>, vector<16x128xi32>,
    return
  }
  func.func @transform_0(%arg0: i32) -> (i32, i32) {
    %c0_i32 = arith.constant 0 : i32
    %c0_i32_0 = arith.constant 0 : i32
    return %arg0, %c0_i32 : i32, i32
  }
  func.func @transform_1(%arg0: i32) -> (i32, i32) {
    %c0_i32 = arith.constant 0 : i32
    %c0_i32_0 = arith.constant 0 : i32
    return %arg0, %c0_i32 : i32, i32
  }
  func.func @transform_2(%arg0: i32) -> (i32, i32) {
    %c0_i32 = arith.constant 0 : i32
    %c0_i32_0 = arith.constant 0 : i32
    return %arg0, %c0_i32 : i32, i32
  }
  func.func @transform_3(%arg0: i32) -> (i32, i32) {
    %c0_i32 = arith.constant 0 : i32
    %c0_i32_0 = arith.constant 0 : i32
    return %arg0, %c0_i32 : i32, i32
  }
  func.func @transform_4(%arg0: i32) -> (i32, i32) {
    %c0_i32 = arith.constant 0 : i32
    %c0_i32_0 = arith.constant 0 : i32
    return %arg0, %c0_i32 : i32, i32
  }
  func.func @transform_5(%arg0: i32) -> (i32, i32) {
    %c0_i32 = arith.constant 0 : i32
    %c0_i32_0 = arith.constant 0 : i32
    return %arg0, %c0_i32 : i32, i32
  }
  func.func @transform_6(%arg0: i32) -> (i32, i32) {
    %c0_i32 = arith.constant 0 : i32
    %c0_i32_0 = arith.constant 0 : i32
    return %arg0, %c0_i32 : i32, i32
  }
  func.func @transform_7(%arg0: i32) -> (i32, i32) {
    %c0_i32 = arith.constant 0 : i32
    %c0_i32_0 = arith.constant 0 : i32
    return %arg0, %c0_i32 : i32, i32
  }
}

</mosaic_0001>

<llo_original>
// kernel: pt_module_forward.1
$region0: #{pt_module_forward.1}
  #allocation0 [shape = 'u32[]', space=smem, size = 0x4, offset = 0x4, fixed_abs, tag = 'smem constant byte address 0x4 - core index']
  #allocation1 [shape = 'u32[72,128]{1,0:T(1,128)}', space=vmem, size = 0x9000, scoped, tag = 'internal scratch']
  %s0 = inlined_call_operand.vmem [shape: f32[16,128], index: 0, kind: input, shape index: {}]
  %s1 = inlined_call_operand.vmem [shape: f32[16,128], index: 1, kind: output, shape index: {0}]
  %s2 = inlined_call_operand.vmem [shape: f32[16,128], index: 2, kind: output, shape index: {1}]
  %s3 = inlined_call_operand.vmem [shape: f32[16,128], index: 3, kind: output, shape index: {2}]
  %s4 = inlined_call_operand.vmem [shape: f32[16,128], index: 4, kind: output, shape index: {3}]
  %s5 = inlined_call_operand.vmem [shape: s32[16,128], index: 5, kind: output, shape index: {4}]
  %s6 = inlined_call_operand.vmem [shape: s32[16,128], index: 6, kind: output, shape index: {5}]
  %s7 = inlined_call_operand.vmem [shape: s32[16,128], index: 7, kind: output, shape index: {6}]
  %8 = xla_tuple %s1, %s2, %s3, %s4, %s5, %s6, %s7
  %s9 = sld [smem:[#allocation0]]
  $region62: #{pt_module_forward.1} parent=0
    _
  %s11 = ssub.s32 1, %s9
  %s12 = scalar_select 0, %s11, %s9
  // Predicated region
  $region2: #{pt_module_forward.1} parent=0 // pred_check
    _
  $region3: #{pt_module_forward.1} parent=0 // pred_check_branch
    %14 = sbr.rel (0) target = $region5
  $region4: #{pt_module_forward.1} parent=0 // pred_region
    _
  $region5: #{pt_module_forward.1} parent=0 // pred_fallthru
    _
  %v15 = vld [vmem:[%s0] sm:$0xff]
  %v16 = vld [vmem:[%s0 + $0x8] sm:$0xff]
  %v17 = vadd.f32 %v15, 2.0
  %v18 = vadd.f32 %v16, 2.0
  %19 = vst [vmem:[%s1] sm:$0xff] %v17
  %20 = vst [vmem:[%s1 + $0x8] sm:$0xff] %v18
  %v21 = vsub.f32 %v15, 3.0
  %v22 = vsub.f32 %v16, 3.0
  %23 = vst [vmem:[%s2] sm:$0xff] %v21
  %24 = vst [vmem:[%s2 + $0x8] sm:$0xff] %v22
  %v25 = vmul.f32 %v15, 4.0
  %v26 = vmul.f32 %v16, 4.0
  %27 = vst [vmem:[%s3] sm:$0xff] %v25
  %28 = vst [vmem:[%s3 + $0x8] sm:$0xff] %v26
  %v29 = vrcp.pop 5.0
  %v30 = vmul.f32 5.0, %v29
  %v31 = vsub.f32 1.0, %v30
  %v32 = vmul.f32 %v29, %v31
  %v33 = vadd.f32 %v29, %v32
  %vm34 = vweird.f32 %v29
  %v35 = vsel %vm34, %v29, %v33
  %v36 = vmul.f32 %v15, %v35
  %v37 = vmul.f32 %v16, %v35
  %38 = vst [vmem:[%s4] sm:$0xff] %v36
  %39 = vst [vmem:[%s4 + $0x8] sm:$0xff] %v37
  %vm40 = vcmp.gt.f32.partialorder %v15, 1.0
  %vm41 = vcmp.gt.f32.partialorder %v16, 1.0
  %v42 = vsel %vm40, 1, 0
  %v43 = vsel %vm41, 1, 0
  %44 = vst [vmem:[%s5] sm:$0xff] %v42
  %45 = vst [vmem:[%s5 + $0x8] sm:$0xff] %v43
  %vm46 = vcmp.lt.f32.partialorder %v15, 2.0
  %vm47 = vcmp.lt.f32.partialorder %v16, 2.0
  %v48 = vsel %vm46, 1, 0
  %v49 = vsel %vm47, 1, 0
  %50 = vst [vmem:[%s6] sm:$0xff] %v48
  %51 = vst [vmem:[%s6 + $0x8] sm:$0xff] %v49
  %vm52 = vcmp.eq.f32.partialorder %v15, 2.0
  %vm53 = vcmp.eq.f32.partialorder %v16, 2.0
  %v54 = vsel %vm52, 1, 0
  %v55 = vsel %vm53, 1, 0
  %56 = vst [vmem:[%s7] sm:$0xff] %v54
  %57 = vst [vmem:[%s7 + $0x8] sm:$0xff] %v55
  // Predicated region
  $region6: #{pt_module_forward.1} parent=0 // pred_check
    _
  $region7: #{pt_module_forward.1} parent=0 // pred_check_branch
    %59 = sbr.rel (0) target = $region9
  $region8: #{pt_module_forward.1} parent=0 // pred_region
    _
  $region9: #{pt_module_forward.1} parent=0 // pred_fallthru
    _
  // Predicated region
  $region10: #{pt_module_forward.1} parent=0 // pred_check
    _
  $region11: #{pt_module_forward.1} parent=0 // pred_check_branch
    %61 = sbr.rel (0) target = $region13
  $region12: #{pt_module_forward.1} parent=0 // pred_region
    _
  $region13: #{pt_module_forward.1} parent=0 // pred_fallthru
    _
  // Predicated region
  $region14: #{pt_module_forward.1} parent=0 // pred_check
    _
  $region15: #{pt_module_forward.1} parent=0 // pred_check_branch
    %63 = sbr.rel (0) target = $region17
  $region16: #{pt_module_forward.1} parent=0 // pred_region
    _
  $region17: #{pt_module_forward.1} parent=0 // pred_fallthru
    _
  // Predicated region
  $region18: #{pt_module_forward.1} parent=0 // pred_check
    _
  $region19: #{pt_module_forward.1} parent=0 // pred_check_branch
    %65 = sbr.rel (0) target = $region21
  $region20: #{pt_module_forward.1} parent=0 // pred_region
    _
  $region21: #{pt_module_forward.1} parent=0 // pred_fallthru
    _
  // Predicated region
  $region22: #{pt_module_forward.1} parent=0 // pred_check
    _
  $region23: #{pt_module_forward.1} parent=0 // pred_check_branch
    %67 = sbr.rel (0) target = $region25
  $region24: #{pt_module_forward.1} parent=0 // pred_region
    _
  $region25: #{pt_module_forward.1} parent=0 // pred_fallthru
    _
  // Predicated region
  $region26: #{pt_module_forward.1} parent=0 // pred_check
    _
  $region27: #{pt_module_forward.1} parent=0 // pred_check_branch
    %69 = sbr.rel (0) target = $region29
  $region28: #{pt_module_forward.1} parent=0 // pred_region
    _
  $region29: #{pt_module_forward.1} parent=0 // pred_fallthru
    _
  // Predicated region
  $region30: #{pt_module_forward.1} parent=0 // pred_check
    _
  $region31: #{pt_module_forward.1} parent=0 // pred_check_branch
    %71 = sbr.rel (0) target = $region33
  $region32: #{pt_module_forward.1} parent=0 // pred_region
    _
  $region33: #{pt_module_forward.1} parent=0 // pred_fallthru
    _
  // Predicated region
  $region34: #{pt_module_forward.1} parent=0 // pred_check
    _
  $region35: #{pt_module_forward.1} parent=0 // pred_check_branch
    %73 = sbr.rel (0) target = $region37
  $region36: #{pt_module_forward.1} parent=0 // pred_region
    _
  $region37: #{pt_module_forward.1} parent=0 // pred_fallthru
    _
  // Predicated region
  $region38: #{pt_module_forward.1} parent=0 // pred_check
    _
  $region39: #{pt_module_forward.1} parent=0 // pred_check_branch
    %75 = sbr.rel (0) target = $region41
  $region40: #{pt_module_forward.1} parent=0 // pred_region
    _
  $region41: #{pt_module_forward.1} parent=0 // pred_fallthru
    _
  // Predicated region
  $region42: #{pt_module_forward.1} parent=0 // pred_check
    _
  $region43: #{pt_module_forward.1} parent=0 // pred_check_branch
    %77 = sbr.rel (0) target = $region45
  $region44: #{pt_module_forward.1} parent=0 // pred_region
    _
  $region45: #{pt_module_forward.1} parent=0 // pred_fallthru
    _
  // Predicated region
  $region46: #{pt_module_forward.1} parent=0 // pred_check
    _
  $region47: #{pt_module_forward.1} parent=0 // pred_check_branch
    %79 = sbr.rel (0) target = $region49
  $region48: #{pt_module_forward.1} parent=0 // pred_region
    _
  $region49: #{pt_module_forward.1} parent=0 // pred_fallthru
    _
  // Predicated region
  $region50: #{pt_module_forward.1} parent=0 // pred_check
    _
  $region51: #{pt_module_forward.1} parent=0 // pred_check_branch
    %81 = sbr.rel (0) target = $region53
  $region52: #{pt_module_forward.1} parent=0 // pred_region
    _
  $region53: #{pt_module_forward.1} parent=0 // pred_fallthru
    _
  // Predicated region
  $region54: #{pt_module_forward.1} parent=0 // pred_check
    _
  $region55: #{pt_module_forward.1} parent=0 // pred_check_branch
    %83 = sbr.rel (0) target = $region57
  $region56: #{pt_module_forward.1} parent=0 // pred_region
    _
  $region57: #{pt_module_forward.1} parent=0 // pred_fallthru
    _
  // Predicated region
  $region58: #{pt_module_forward.1} parent=0 // pred_check
    _
  $region59: #{pt_module_forward.1} parent=0 // pred_check_branch
    %85 = sbr.rel (0) target = $region61
  $region60: #{pt_module_forward.1} parent=0 // pred_region
    _
  $region61: #{pt_module_forward.1} parent=0 // pred_fallthru
    _

</llo_original>
